<compile_context>
chip_gen: v7x
topology: tpu7x:2x2x1
jax: 0.10.0
libtpu: 0.0.40
codegen_flags: <defaults>
</compile_context>

<pallas_src>
import jax
import jax.numpy as jnp
from jax.experimental import pallas as pl
from jax.experimental.pallas import tpu as pltpu  # noqa: F401  (TPU backend assumed)

DROPOUT_P = 0.5                      # torch.nn.functional.dropout default
_SCALE = 1.0 / (1.0 - DROPOUT_P)     # = 2.0


def _dropout_add_kernel(t0_ref, u_ref, t2_ref, t3_ref):
    """t3 = t2 + dropout(t0, p=0.5) for a single element.

    t0_ref : VMEM f32[1,1]  value being dropped out (torch.rand(1))
    u_ref  : VMEM f32[1,1]  uniform draw deciding the dropout mask
    t2_ref : VMEM f32[1,1]  torch.rand_like(t0)
    t3_ref : VMEM f32[1,1]  output
    """
    # keep with probability 1 - p = 0.5, scale kept values by 1/(1-p) = 2
    keep = (u_ref[...] >= jnp.float32(DROPOUT_P)).astype(jnp.float32)
    t1 = keep * t0_ref[...] * jnp.float32(_SCALE)
    t3_ref[...] = t2_ref[...] + t1


@jax.jit
def _init_compute(key):
    """Reproduces the Model.__init__ tensor math: one jit, one Pallas call.

    key : jax PRNG key
    Returns the logical f32[1] tensor t3 = t2 + dropout(t0).
    """
    k0, k1, k2 = jax.random.split(key, 3)
    t0 = jax.random.uniform(k0, (1, 1), dtype=jnp.float32)  # torch.rand(1)
    u = jax.random.uniform(k1, (1, 1), dtype=jnp.float32)   # dropout mask draw
    t2 = jax.random.uniform(k2, (1, 1), dtype=jnp.float32)  # torch.rand_like(t0)

    # Full-extent (1,1) blocks, no grid: a single grid-free kernel invocation.
    spec = pl.BlockSpec((1, 1), lambda: (0, 0))
    t3 = pl.pallas_call(
        _dropout_add_kernel,
        out_shape=jax.ShapeDtypeStruct((1, 1), jnp.float32),
        in_specs=[spec, spec, spec],
        out_specs=spec,
    )(t0, u, t2)
    # logical shape is (1,), like the torch tensor; reshape stays in the jit.
    return t3.reshape((1,))


class Model:
    """JAX/Pallas counterpart of the PyTorch Model."""

    def __init__(self, key=None):
        if key is None:
            key = jax.random.PRNGKey(0)
        # Mirrors the torch __init__: t3 is computed and then effectively
        # discarded (the torch module never stores it either). We keep the
        # value only so the kernel result can be inspected / blocked on.
        # NOTE: the uniform stream will not match torch's RNG bit-for-bit.
        self._t3 = _init_compute(key)

    def forward(self):
        # The torch forward body is `...` -> returns None.
        ...

    def __call__(self):
        return self.forward()


if __name__ == "__main__":
    key = jax.random.PRNGKey(0)
    model = Model(key)
    jax.block_until_ready(model._t3)  # the kernel-produced f32[1] value
    out = model()                     # forward() returns None, as in PyTorch
    assert out is None
    print("KERNEL_OK")
</pallas_src>

<mosaic_0001>
module attributes {stable_mosaic.version = 11 : i64} {
  func.func @_dropout_add_kernel(%arg0: memref<1x1xf32, #tpu.memory_space<vmem>>, %arg1: memref<1x1xf32, #tpu.memory_space<vmem>>, %arg2: memref<1x1xf32, #tpu.memory_space<vmem>>, %arg3: memref<1x1xf32, #tpu.memory_space<vmem>>) attributes {dimension_semantics = [], scalar_prefetch = 0 : i64, scratch_operands = 0 : i64, tpu.core_type = #tpu.core_type<tc>} {
    %c0 = arith.constant 0 : index
    %c0_0 = arith.constant 0 : index
    %0 = vector.load %arg1[%c0, %c0_0] : memref<1x1xf32, #tpu.memory_space<vmem>>, vector<1x1xf32>
    %cst = arith.constant 5.000000e-01 : f32
    %1 = vector.broadcast %cst : f32 to vector<1x1xf32>
    %2 = arith.cmpf oge, %0, %1 : vector<1x1xf32>
    %3 = arith.extui %2 : vector<1x1xi1> to vector<1x1xi32>
    %4 = arith.sitofp %3 : vector<1x1xi32> to vector<1x1xf32>
    %c0_1 = arith.constant 0 : index
    %c0_2 = arith.constant 0 : index
    %5 = vector.load %arg0[%c0_1, %c0_2] : memref<1x1xf32, #tpu.memory_space<vmem>>, vector<1x1xf32>
    %6 = arith.mulf %4, %5 : vector<1x1xf32>
    %cst_3 = arith.constant 2.000000e+00 : f32
    %7 = vector.broadcast %cst_3 : f32 to vector<1x1xf32>
    %8 = arith.mulf %6, %7 : vector<1x1xf32>
    %c0_4 = arith.constant 0 : index
    %c0_5 = arith.constant 0 : index
    %9 = vector.load %arg2[%c0_4, %c0_5] : memref<1x1xf32, #tpu.memory_space<vmem>>, vector<1x1xf32>
    %10 = arith.addf %9, %8 : vector<1x1xf32>
    %c0_6 = arith.constant 0 : index
    %c0_7 = arith.constant 0 : index
    %11 = vector.load %arg3[%c0_6, %c0_7] : memref<1x1xf32, #tpu.memory_space<vmem>>, vector<1x1xf32>
    tpu.vector_store %arg3[%c0_6, %c0_7], %10 {strides = array<i32>} : memref<1x1xf32, #tpu.memory_space<vmem>>, vector<1x1xf32>,
    return
  }
}

</mosaic_0001>

<llo_original>
// kernel: _init_compute.3
$region0: #{_init_compute.3}
  #allocation0 [shape = 'u32[]', space=smem, size = 0x4, offset = 0x4, fixed_abs, tag = 'smem constant byte address 0x4 - core index']
  #allocation1 [shape = 'u32[144,128]{1,0:T(1,128)}', space=vmem, size = 0x12000, scoped, tag = 'internal scratch']
  #allocation2 [shape = 'f32[1,1]{1,0:T(1,128)S(1)}', space=vmem, size = 0x200, scoped, tag = 'scoped memory for _init_compute.3']
  #allocation3 [shape = 'f32[1,1]{1,0:T(1,128)S(1)}', space=vmem, size = 0x200, scoped, tag = 'scoped memory for _init_compute.3']
  #allocation4 [shape = 'f32[1,1]{1,0:T(1,128)S(1)}', space=vmem, size = 0x200, scoped, tag = 'scoped memory for _init_compute.3']
  %s0 = inlined_call_operand.<no memory space> [shape: f32[1,1], index: 0, kind: input, shape index: {}]
  %s1 = inlined_call_operand.<no memory space> [shape: f32[1,1], index: 1, kind: input, shape index: {}]
  %s2 = inlined_call_operand.<no memory space> [shape: f32[1,1], index: 2, kind: input, shape index: {}]
  %s3 = inlined_call_operand.hbm [shape: f32[1,1], index: 3, kind: output, shape index: {}]
  %s4 = sld [smem:[#allocation0]]
  $region22: #{_init_compute.3} parent=0
    _
  %s6 = ssub.s32 1, %s4
  %s7 = scalar_select 0, %s6, %s4
  %v8 = vstv %s0
  %9 = vst [vmem:[#allocation2] sm:$0x1] %v8
  %v10 = vstv %s1
  %11 = vst [vmem:[#allocation3] sm:$0x1] %v10
  %v12 = vstv %s2
  %13 = vst [vmem:[#allocation4] sm:$0x1] %v12
  $region1: #{_init_compute.3} parent=0
    #allocation5 [shape = 'u8[512]{0}', space=vmem, size = 0x400, scoped, tag = 'output window, operand 0, single buffered']
    #allocation6 [shape = 's32[1]{0}', space=sflag, size = 0x4, scoped, tag = 'scoped memory for _init_compute.3']
    %14 = vsyncpa [#allocation6], 0
    // Predicated region
    $region2: #{_init_compute.3} parent=1 // pred_check
      _
    $region3: #{_init_compute.3} parent=1 // pred_check_branch
      %16 = sbr.rel (0) target = $region5
    $region4: #{_init_compute.3} parent=1 // pred_region
      _
    $region5: #{_init_compute.3} parent=1 // pred_fallthru
      _
    // Predicated region
    $region6: #{_init_compute.3} parent=1 // pred_check
      _
    $region7: #{_init_compute.3} parent=1 // pred_check_branch
      %18 = sbr.rel (0) target = $region9
    $region8: #{_init_compute.3} parent=1 // pred_region
      _
    $region9: #{_init_compute.3} parent=1 // pred_fallthru
      _
    // Predicated region
    $region10: #{_init_compute.3} parent=1 // pred_check
      _
    $region11: #{_init_compute.3} parent=1 // pred_check_branch
      %20 = sbr.rel (0) target = $region13
    $region12: #{_init_compute.3} parent=1 // pred_region
      _
    $region13: #{_init_compute.3} parent=1 // pred_fallthru
      _
    %v21 = vld [vmem:[#allocation3] sm:$0x1]
    %vm22 = vcmp.ge.f32.partialorder %v21, 0.5
    %v23 = vsel %vm22, 1, 0
    %v24 = vcvt.s32.f32 %v23
    %v25 = vld [vmem:[#allocation2] sm:$0x1]
    %v26 = vmul.f32 %v24, %v25
    %v27 = vmul.f32 %v26, 2.0
    %v28 = vld [vmem:[#allocation4] sm:$0x1]
    %v29 = vadd.f32 %v28, %v27
    %vm30 = vcmask 0
    %31 = vst.msk [vmem:[#allocation5] sm:$0x1] %vm30, %v29
    // Predicated region
    $region14: #{_init_compute.3} parent=1 // pred_check
      _
    $region15: #{_init_compute.3} parent=1 // pred_check_branch
      %33 = sbr.rel (0) target = $region17
    $region16: #{_init_compute.3} parent=1 // pred_region
      %s35 = ssub.s32 16, 16
      %36 = vsyncadd [#allocation6], %s35
      %s38 = sshll.u32 [#allocation5], 4
      %s39 = int_to_ptr.vmem [resolvable:$true] %s38
      %41 = dma.vmem_to_hbm [thread:$0]  %s39, 16, %s3, [#allocation6]
    $region17: #{_init_compute.3} parent=1 // pred_fallthru
      _
    // Predicated region
    $region18: #{_init_compute.3} parent=1 // pred_check
      _
    $region19: #{_init_compute.3} parent=1 // pred_check_branch
      %43 = sbr.rel (0) target = $region21
    $region20: #{_init_compute.3} parent=1 // pred_region
      %44 = dma.done [#allocation6], 16
    $region21: #{_init_compute.3} parent=1 // pred_fallthru
      _
    %45 = vsyncpa [#allocation6], 1

</llo_original>
